<compile_context>
chip_gen: v6e
topology: v6e:2x2x1
jax: 0.10.0
libtpu: 0.0.40
codegen_flags: <defaults>
</compile_context>

<pallas_src>
import jax
import jax.numpy as jnp
from jax.experimental import pallas as pl
from jax.experimental.pallas import tpu as pltpu

IN_FEATURES = 4
OUT_FEATURES = 4
ROWS_PER_SLAB_ROW = 128 // IN_FEATURES          # 32 original rows per 128-lane row
MAX_BLOCK_ROWS = 4096                           # (4096,128) f32 = 2 MiB per buffer
MAX_STASH_BYTES = 8 * 1024 * 1024               # y-stash scratch budget
VMEM_LIMIT_BYTES = 32 * 1024 * 1024             # == v6e/v7x scoped default; raises v5e's 16


def _round_up(n, m):
    return ((n + m - 1) // m) * m


def _compute_y(x_ref, w_ref, b_ref):
    # Lane-dense linear layer: (rows,128) @ block-diag(W^T) + tiled bias.
    return jnp.dot(x_ref[...], w_ref[...],
                   preferred_element_type=jnp.float32) + b_ref[...]


def _mycell_single_kernel(corr_ref, x_ref, h_ref, w_ref, b_ref, out_ref):
    """Whole (padded) batch in one tile: compute y, gate, tanh, store."""
    y = _compute_y(x_ref, w_ref, b_ref)
    row = jnp.sum(y, axis=1, keepdims=True)                       # lane reduce
    total = jnp.sum(row, axis=0, keepdims=True) + corr_ref[...]   # sublane reduce
    # dg(y) = y if sum(y) > 0 else -y  ==  sign * y with sign in {+1,-1}
    sign = jnp.where(total > 0.0, 1.0, -1.0)                      # (1,1) splat
    out_ref[...] = jnp.tanh(sign * y + h_ref[...]).astype(out_ref.dtype)


def _make_twopass_kernel(stash_y):
    """Two-pass kernel over grid=(pass, batch_tile) for multi-tile batches."""

    def kernel(corr_ref, x_ref, h_ref, w_ref, b_ref, out_ref, acc_ref, *scratch):
        p = pl.program_id(0)
        t = pl.program_id(1)
        y_scr = scratch[0] if stash_y else None

        @pl.when((p == 0) & (t == 0))
        def _init():
            acc_ref[...] = corr_ref[...]   # pre-load -n_pad * sum(bias)

        @pl.when(p == 0)
        def _accumulate():
            y = _compute_y(x_ref, w_ref, b_ref)
            row = jnp.sum(y, axis=1, keepdims=True)
            acc_ref[...] += jnp.sum(row, axis=0, keepdims=True)
            if stash_y:
                y_scr[t] = y

        @pl.when(p == 1)
        def _apply():
            if stash_y:
                y = y_scr[t]
            else:
                y = _compute_y(x_ref, w_ref, b_ref)
            sign = jnp.where(acc_ref[...] > 0.0, 1.0, -1.0)
            out_ref[...] = jnp.tanh(sign * y + h_ref[...]).astype(out_ref.dtype)

    return kernel


def mycell_forward(x, h, w, b, *, block_rows=None, stash_y=None):
    """x, h: (B, 4); w: (4, 4) torch layout (out, in); b: (4,).

    Returns (new_h, new_h) like the PyTorch module.
    """
    B, F = x.shape
    assert F == IN_FEATURES and h.shape == (B, F)
    assert w.shape == (OUT_FEATURES, IN_FEATURES) and b.shape == (OUT_FEATURES,)

    xf = jnp.asarray(x, jnp.float32)
    hf = jnp.asarray(h, jnp.float32)
    wf = jnp.asarray(w, jnp.float32)
    bf = jnp.asarray(b, jnp.float32)

    # Parameter re-layout (constant-foldable): block-diagonal kron(I_32, W^T)
    # maps the width-4 contraction onto the full 128-lane width; bias tiled
    # across the 32 packed rows.
    w_big = jnp.kron(jnp.eye(ROWS_PER_SLAB_ROW, dtype=jnp.float32), wf.T)  # (128,128)
    b_tile = jnp.tile(bf, ROWS_PER_SLAB_ROW).reshape(1, 128)               # (1,128)

    # Lane-dense slab shaping + tile selection (no full-array fallback tile:
    # every path pads to a multiple of the block, so VMEM stays bounded).
    slab_rows_raw = max(-(-B // ROWS_PER_SLAB_ROW), 1)
    if block_rows is None:
        block_rows = min(_round_up(slab_rows_raw, 8), MAX_BLOCK_ROWS)
    assert block_rows >= 8 and block_rows % 8 == 0
    slab_rows = _round_up(slab_rows_raw, block_rows)
    num_tiles = slab_rows // block_rows

    b_pad = slab_rows * ROWS_PER_SLAB_ROW
    n_pad = b_pad - B
    # Each zero-padded row contributes exactly sum(bias) to sum(y); cancel it.
    corr = (-float(n_pad) * jnp.sum(bf)).reshape(1, 1).astype(jnp.float32)

    x_slab = jnp.pad(xf, ((0, n_pad), (0, 0))).reshape(slab_rows, 128)
    h_slab = jnp.pad(hf, ((0, n_pad), (0, 0))).reshape(slab_rows, 128)

    out_shape = jax.ShapeDtypeStruct((slab_rows, 128), jnp.float32)
    block = (block_rows, 128)

    if num_tiles == 1:
        # Fast path: single grid step, no accumulator scratch, x read once.
        out_slab = pl.pallas_call(
            _mycell_single_kernel,
            out_shape=out_shape,
            grid_spec=pltpu.PrefetchScalarGridSpec(
                num_scalar_prefetch=0,
                grid=(1,),
                in_specs=[
                    pl.BlockSpec((1, 1), lambda i: (0, 0)),       # corr
                    pl.BlockSpec(block, lambda i: (0, 0)),        # x slab
                    pl.BlockSpec(block, lambda i: (0, 0)),        # h slab
                    pl.BlockSpec((128, 128), lambda i: (0, 0)),   # block-diag W^T
                    pl.BlockSpec((1, 128), lambda i: (0, 0)),     # bias tile
                ],
                out_specs=pl.BlockSpec(block, lambda i: (0, 0)),
            ),
            compiler_params=pltpu.CompilerParams(
                dimension_semantics=("arbitrary",),
                vmem_limit_bytes=VMEM_LIMIT_BYTES,
            ),
        )(corr, x_slab, h_slab, w_big, b_tile)
    else:
        y_stash_bytes = slab_rows * 128 * 4
        if stash_y is None:
            stash_y = y_stash_bytes <= MAX_STASH_BYTES
        kernel = _make_twopass_kernel(stash_y)

        # With the stash, x only needs to stream during pass 0; pin its block
        # index to 0 during pass 1 so no extra HBM reads are issued.
        x_map = (lambda p, t: ((1 - p) * t, 0)) if stash_y else (lambda p, t: (t, 0))

        scratch_shapes = [pltpu.VMEM((1, 1), jnp.float32)]          # running sum(y)
        if stash_y:
            scratch_shapes.append(
                pltpu.VMEM((num_tiles, block_rows, 128), jnp.float32))

        out_slab = pl.pallas_call(
            kernel,
            out_shape=out_shape,
            grid_spec=pltpu.PrefetchScalarGridSpec(
                num_scalar_prefetch=0,
                grid=(2, num_tiles),   # (pass, batch tile)
                in_specs=[
                    pl.BlockSpec((1, 1), lambda p, t: (0, 0)),       # corr
                    pl.BlockSpec(block, x_map),                      # x slab
                    pl.BlockSpec(block, lambda p, t: (p * t, 0)),    # h (pass 1 only)
                    pl.BlockSpec((128, 128), lambda p, t: (0, 0)),   # block-diag W^T
                    pl.BlockSpec((1, 128), lambda p, t: (0, 0)),     # bias tile
                ],
                # p*t: stays on block 0 for all of pass 0 (no uninitialized
                # output block is ever written back); advances only in pass 1.
                out_specs=pl.BlockSpec(block, lambda p, t: (p * t, 0)),
                scratch_shapes=scratch_shapes,
            ),
            compiler_params=pltpu.CompilerParams(
                # Pass ordering + sequential scratch accumulation => arbitrary.
                dimension_semantics=("arbitrary", "arbitrary"),
                vmem_limit_bytes=VMEM_LIMIT_BYTES,
            ),
        )(corr, x_slab, h_slab, w_big, b_tile)

    new_h = out_slab.reshape(b_pad, IN_FEATURES)[:B]
    return new_h, new_h


def _reference(x, h, w, b):
    y = x @ w.T + b
    g = jnp.where(jnp.sum(y) > 0.0, y, -y)
    return jnp.tanh(g + h)


if __name__ == "__main__":
    key = jax.random.PRNGKey(0)
    kx, kh, kw, kb = jax.random.split(key, 4)

    B, F = 8, 4  # batch 8, feature dim 4 (matches nn.Linear(4, 4))
    x = jax.random.normal(kx, (B, F), dtype=jnp.float32)
    h = jax.random.normal(kh, (B, F), dtype=jnp.float32)
    # Deterministic "parameter init" mimicking torch.nn.Linear's uniform init.
    bound = 1.0 / jnp.sqrt(jnp.float32(F))
    w = jax.random.uniform(kw, (F, F), minval=-bound, maxval=bound, dtype=jnp.float32)
    bias = jax.random.uniform(kb, (F,), minval=-bound, maxval=bound, dtype=jnp.float32)

    # 1) Common small-batch case -> single-pass lane-dense kernel.
    new_h, new_h2 = mycell_forward(x, h, w, bias)
    jax.block_until_ready(new_h)
    ref = _reference(x, h, w, bias)
    assert new_h.shape == (B, F)
    assert jnp.allclose(new_h, ref, atol=1e-5, rtol=1e-5)
    assert jnp.array_equal(new_h, new_h2)

    # 2) Multi-tile two-pass path with y-stash + padding correction
    #    (B not a multiple of 32, forced small block to exercise the grid).
    kx2, kh2 = jax.random.split(jax.random.PRNGKey(1), 2)
    B2 = 600
    x2 = jax.random.normal(kx2, (B2, F), dtype=jnp.float32)
    h2 = jax.random.normal(kh2, (B2, F), dtype=jnp.float32)
    out2, _ = mycell_forward(x2, h2, w, bias, block_rows=8)
    jax.block_until_ready(out2)
    ref2 = _reference(x2, h2, w, bias)
    assert jnp.allclose(out2, ref2, atol=1e-5, rtol=1e-5)

    # 3) Two-pass recompute path (stash disabled) + negative-sum gate branch.
    bias_neg = bias - 5.0
    out3, _ = mycell_forward(x2, h2, w, bias_neg, block_rows=8, stash_y=False)
    jax.block_until_ready(out3)
    ref3 = _reference(x2, h2, w, bias_neg)
    assert jnp.allclose(out3, ref3, atol=1e-5, rtol=1e-5)

    print("KERNEL_OK")
</pallas_src>

<mosaic_0001>
module attributes {stable_mosaic.version = 11 : i64} {
  func.func @_mycell_single_kernel(%arg0: i32, %arg1: memref<1x1xf32, #tpu.memory_space<vmem>>, %arg2: memref<8x128xf32, #tpu.memory_space<vmem>>, %arg3: memref<8x128xf32, #tpu.memory_space<vmem>>, %arg4: memref<128x128xf32, #tpu.memory_space<vmem>>, %arg5: memref<1x128xf32, #tpu.memory_space<vmem>>, %arg6: memref<8x128xf32, #tpu.memory_space<vmem>>) attributes {dimension_semantics = [#tpu.dimension_semantics<arbitrary>], iteration_bounds = array<i64: 1>, scalar_prefetch = 0 : i64, scratch_operands = 0 : i64, tpu.core_type = #tpu.core_type<tc>, window_params = [{pipeline_mode = #tpu.pipeline_mode<synchronous>, transform_indices = @transform_0, window_bounds = array<i64: 1, 1>}, {pipeline_mode = #tpu.pipeline_mode<synchronous>, transform_indices = @transform_1, window_bounds = array<i64: 8, 128>}, {pipeline_mode = #tpu.pipeline_mode<synchronous>, transform_indices = @transform_2, window_bounds = array<i64: 8, 128>}, {pipeline_mode = #tpu.pipeline_mode<synchronous>, transform_indices = @transform_3, window_bounds = array<i64: 128, 128>}, {pipeline_mode = #tpu.pipeline_mode<synchronous>, transform_indices = @transform_4, window_bounds = array<i64: 1, 128>}, {pipeline_mode = #tpu.pipeline_mode<synchronous>, transform_indices = @transform_5, window_bounds = array<i64: 8, 128>}]} {
    %c0 = arith.constant 0 : index
    %c0_0 = arith.constant 0 : index
    %0 = vector.load %arg2[%c0, %c0_0] : memref<8x128xf32, #tpu.memory_space<vmem>>, vector<8x128xf32>
    %c0_1 = arith.constant 0 : index
    %c0_2 = arith.constant 0 : index
    %1 = vector.load %arg4[%c0_1, %c0_2] : memref<128x128xf32, #tpu.memory_space<vmem>>, vector<128x128xf32>
    %cst = arith.constant dense<0.000000e+00> : vector<8x128xf32>
    %2 = tpu.matmul %0, %1, %cst {dimension_numbers = #tpu.dot_dimension_numbers<[1], [0], [0], [1], [0, 0, 1, 1], [], []>} : vector<8x128xf32>, vector<128x128xf32>, vector<8x128xf32> -> vector<8x128xf32>
    %c0_3 = arith.constant 0 : index
    %c0_4 = arith.constant 0 : index
    %3 = vector.load %arg5[%c0_3, %c0_4] : memref<1x128xf32, #tpu.memory_space<vmem>>, vector<1x128xf32>
    %4 = vector.broadcast %3 : vector<1x128xf32> to vector<8x128xf32>
    %5 = arith.addf %2, %4 : vector<8x128xf32>
    %cst_5 = arith.constant dense<0.000000e+00> : vector<8xf32>
    %6 = vector.multi_reduction <add>, %5, %cst_5 [1] : vector<8x128xf32> to vector<8xf32>
    %7 = vector.shape_cast %6 : vector<8xf32> to vector<8x1xf32>
    %cst_6 = arith.constant dense<0.000000e+00> : vector<1xf32>
    %8 = vector.multi_reduction <add>, %7, %cst_6 [0] : vector<8x1xf32> to vector<1xf32>
    %9 = vector.shape_cast %8 : vector<1xf32> to vector<1x1xf32>
    %c0_7 = arith.constant 0 : index
    %c0_8 = arith.constant 0 : index
    %10 = vector.load %arg1[%c0_7, %c0_8] : memref<1x1xf32, #tpu.memory_space<vmem>>, vector<1x1xf32>
    %11 = arith.addf %9, %10 : vector<1x1xf32>
    %cst_9 = arith.constant 0.000000e+00 : f32
    %12 = vector.broadcast %cst_9 : f32 to vector<1x1xf32>
    %13 = arith.cmpf ogt, %11, %12 : vector<1x1xf32>
    %cst_10 = arith.constant 1.000000e+00 : f32
    %cst_11 = arith.constant -1.000000e+00 : f32
    %14 = vector.broadcast %cst_10 : f32 to vector<1x1xf32>
    %15 = vector.broadcast %cst_11 : f32 to vector<1x1xf32>
    %16 = arith.select %13, %14, %15 : vector<1x1xi1>, vector<1x1xf32>
    %17 = vector.broadcast %16 : vector<1x1xf32> to vector<8x128xf32>
    %18 = arith.mulf %17, %5 : vector<8x128xf32>
    %c0_12 = arith.constant 0 : index
    %c0_13 = arith.constant 0 : index
    %19 = vector.load %arg3[%c0_12, %c0_13] : memref<8x128xf32, #tpu.memory_space<vmem>>, vector<8x128xf32>
    %20 = arith.addf %18, %19 : vector<8x128xf32>
    %21 = math.tanh %20 : vector<8x128xf32>
    %c0_14 = arith.constant 0 : index
    %c0_15 = arith.constant 0 : index
    %22 = vector.load %arg6[%c0_14, %c0_15] : memref<8x128xf32, #tpu.memory_space<vmem>>, vector<8x128xf32>
    tpu.vector_store %arg6[%c0_14, %c0_15], %21 {strides = array<i32>} : memref<8x128xf32, #tpu.memory_space<vmem>>, vector<8x128xf32>,
    return
  }
  func.func @transform_0(%arg0: i32) -> (i32, i32) {
    %c0_i32 = arith.constant 0 : i32
    %c0_i32_0 = arith.constant 0 : i32
    %c0_i32_1 = arith.constant 0 : i32
    return %c0_i32, %c0_i32_0 : i32, i32
  }
  func.func @transform_1(%arg0: i32) -> (i32, i32) {
    %c0_i32 = arith.constant 0 : i32
    %c0_i32_0 = arith.constant 0 : i32
    %c0_i32_1 = arith.constant 0 : i32
    return %c0_i32, %c0_i32_0 : i32, i32
  }
  func.func @transform_2(%arg0: i32) -> (i32, i32) {
    %c0_i32 = arith.constant 0 : i32
    %c0_i32_0 = arith.constant 0 : i32
    %c0_i32_1 = arith.constant 0 : i32
    return %c0_i32, %c0_i32_0 : i32, i32
  }
  func.func @transform_3(%arg0: i32) -> (i32, i32) {
    %c0_i32 = arith.constant 0 : i32
    %c0_i32_0 = arith.constant 0 : i32
    %c0_i32_1 = arith.constant 0 : i32
    return %c0_i32, %c0_i32_0 : i32, i32
  }
  func.func @transform_4(%arg0: i32) -> (i32, i32) {
    %c0_i32 = arith.constant 0 : i32
    %c0_i32_0 = arith.constant 0 : i32
    %c0_i32_1 = arith.constant 0 : i32
    return %c0_i32, %c0_i32_0 : i32, i32
  }
  func.func @transform_5(%arg0: i32) -> (i32, i32) {
    %c0_i32 = arith.constant 0 : i32
    %c0_i32_0 = arith.constant 0 : i32
    %c0_i32_1 = arith.constant 0 : i32
    return %c0_i32, %c0_i32_0 : i32, i32
  }
}

</mosaic_0001>

<llo_original>
// kernel: tpu_custom_call.1
$region0: #{tpu_custom_call.1}
  #allocation0 [shape = 'u32[]', space=smem, size = 0x4, offset = 0x4, fixed_abs, tag = 'smem constant byte address 0x4 - core index']
  #allocation1 [shape = 'u32[144,128]{1,0:T(1,128)}', space=vmem, size = 0x12000, scoped, tag = 'internal scratch']
  #allocation2 [shape = 'f32[1,1]{1,0:T(1,128)S(1)}', space=vmem, size = 0x200, scoped, tag = 'scoped memory for tpu_custom_call.1']
  %s0 = inlined_call_operand.<no memory space> [shape: f32[1,1], index: 0, kind: input, shape index: {}]
  %s1 = inlined_call_operand.hbm [shape: f32[8,128], index: 1, kind: input, shape index: {}]
  %s2 = inlined_call_operand.hbm [shape: f32[8,128], index: 2, kind: input, shape index: {}]
  %s3 = inlined_call_operand.hbm [shape: f32[128,128], index: 3, kind: input, shape index: {}]
  %s4 = inlined_call_operand.vmem [shape: f32[1,128], index: 4, kind: input, shape index: {}]
  %s5 = inlined_call_operand.hbm [shape: f32[8,128], index: 5, kind: output, shape index: {}]
  %s6 = sld [smem:[#allocation0]]
  $region42: #{tpu_custom_call.1} parent=0
    _
  %s8 = ssub.s32 1, %s6
  %s9 = scalar_select 0, %s8, %s6
  %v10 = vstv %s0
  %11 = vst [vmem:[#allocation2] sm:$0x1] %v10
  $region1: #{tpu_custom_call.1} parent=0
    #allocation3 [shape = 'u8[4096]{0}', space=vmem, size = 0x1000, scoped, tag = 'input window, operand 1, single buffered']
    #allocation4 [shape = 's32[1]{0}', space=sflag, size = 0x4, scoped, tag = 'scoped memory for tpu_custom_call.1']
    #allocation5 [shape = 's32[1]{0}', space=sflag, size = 0x4, scoped, tag = 'scoped memory for tpu_custom_call.1']
    #allocation6 [shape = 'u8[4096]{0}', space=vmem, size = 0x1000, scoped, tag = 'input window, operand 2, single buffered']
    #allocation7 [shape = 's32[1]{0}', space=sflag, size = 0x4, scoped, tag = 'scoped memory for tpu_custom_call.1']
    #allocation8 [shape = 'u8[65536]{0}', space=vmem, size = 0x10000, scoped, tag = 'input window, operand 3, single buffered']
    #allocation9 [shape = 'u8[4096]{0}', space=vmem, size = 0x1000, scoped, tag = 'output window, operand 0, single buffered']
    %12 = vsyncpa [#allocation4], 0
    %13 = vsyncpa [#allocation7], 0
    %14 = vsyncpa [#allocation5], 0
    // Predicated region
    $region2: #{tpu_custom_call.1} parent=1 // pred_check
      _
    $region3: #{tpu_custom_call.1} parent=1 // pred_check_branch
      %16 = sbr.rel (0) target = $region5
    $region4: #{tpu_custom_call.1} parent=1 // pred_region
      _
    $region5: #{tpu_custom_call.1} parent=1 // pred_fallthru
      _
    // Predicated region
    $region6: #{tpu_custom_call.1} parent=1 // pred_check
      _
    $region7: #{tpu_custom_call.1} parent=1 // pred_check_branch
      %18 = sbr.rel (0) target = $region9
    $region8: #{tpu_custom_call.1} parent=1 // pred_region
      %s20 = ssub.s32 128, 128
      %21 = vsyncadd [#allocation4], %s20
      %s23 = sshll.u32 [#allocation3], 4
      %s24 = int_to_ptr.vmem [resolvable:$true] %s23
      %26 = dma.hbm_to_vmem [thread:$0]  %s1, 128, %s24, [#allocation4]
    $region9: #{tpu_custom_call.1} parent=1 // pred_fallthru
      _
    // Predicated region
    $region10: #{tpu_custom_call.1} parent=1 // pred_check
      _
    $region11: #{tpu_custom_call.1} parent=1 // pred_check_branch
      %28 = sbr.rel (0) target = $region13
    $region12: #{tpu_custom_call.1} parent=1 // pred_region
      %s30 = ssub.s32 128, 128
      %31 = vsyncadd [#allocation7], %s30
      %s33 = sshll.u32 [#allocation6], 4
      %s34 = int_to_ptr.vmem [resolvable:$true] %s33
      %36 = dma.hbm_to_vmem [thread:$0]  %s2, 128, %s34, [#allocation7]
    $region13: #{tpu_custom_call.1} parent=1 // pred_fallthru
      _
    // Predicated region
    $region14: #{tpu_custom_call.1} parent=1 // pred_check
      _
    $region15: #{tpu_custom_call.1} parent=1 // pred_check_branch
      %38 = sbr.rel (0) target = $region17
    $region16: #{tpu_custom_call.1} parent=1 // pred_region
      %s40 = ssub.s32 2048, 2048
      %41 = vsyncadd [#allocation7], %s40
      %s42 = sshll.u32 [#allocation8], 4
      %s43 = int_to_ptr.vmem [resolvable:$true] %s42
      %48 = dma.hbm_to_vmem [thread:$0]  %s3, 2048, %s43, [#allocation7], 128, 128, 8
    $region17: #{tpu_custom_call.1} parent=1 // pred_fallthru
      _
    // Predicated region
    $region18: #{tpu_custom_call.1} parent=1 // pred_check
      _
    $region19: #{tpu_custom_call.1} parent=1 // pred_check_branch
      %50 = sbr.rel (0) target = $region21
    $region20: #{tpu_custom_call.1} parent=1 // pred_region
      _
    $region21: #{tpu_custom_call.1} parent=1 // pred_fallthru
      _
    // Predicated region
    $region22: #{tpu_custom_call.1} parent=1 // pred_check
      _
    $region23: #{tpu_custom_call.1} parent=1 // pred_check_branch
      %52 = sbr.rel (0) target = $region25
    $region24: #{tpu_custom_call.1} parent=1 // pred_region
      %53 = dma.done [#allocation4], 128
    $region25: #{tpu_custom_call.1} parent=1 // pred_fallthru
      _
    // Predicated region
    $region26: #{tpu_custom_call.1} parent=1 // pred_check
      _
    $region27: #{tpu_custom_call.1} parent=1 // pred_check_branch
      %55 = sbr.rel (0) target = $region29
    $region28: #{tpu_custom_call.1} parent=1 // pred_region
      %56 = dma.done [#allocation7], 128
    $region29: #{tpu_custom_call.1} parent=1 // pred_fallthru
      _
    // Predicated region
    $region30: #{tpu_custom_call.1} parent=1 // pred_check
      _
    $region31: #{tpu_custom_call.1} parent=1 // pred_check_branch
      %58 = sbr.rel (0) target = $region33
    $region32: #{tpu_custom_call.1} parent=1 // pred_region
      %59 = dma.done [#allocation7], 2048
    $region33: #{tpu_custom_call.1} parent=1 // pred_fallthru
      _
    %v60 = vld [vmem:[#allocation3] sm:$0xff]
    %v61 = vld [vmem:[#allocation8] sm:$0xff]
    %v62 = vld [vmem:[#allocation8 + $0x8] sm:$0xff]
    %v63 = vld [vmem:[#allocation8 + $0x10] sm:$0xff]
    %v64 = vld [vmem:[#allocation8 + $0x18] sm:$0xff]
    %v65 = vld [vmem:[#allocation8 + $0x20] sm:$0xff]
    %v66 = vld [vmem:[#allocation8 + $0x28] sm:$0xff]
    %v67 = vld [vmem:[#allocation8 + $0x30] sm:$0xff]
    %v68 = vld [vmem:[#allocation8 + $0x38] sm:$0xff]
    %v69 = vld [vmem:[#allocation8 + $0x40] sm:$0xff]
    %v70 = vld [vmem:[#allocation8 + $0x48] sm:$0xff]
    %v71 = vld [vmem:[#allocation8 + $0x50] sm:$0xff]
    %v72 = vld [vmem:[#allocation8 + $0x58] sm:$0xff]
    %v73 = vld [vmem:[#allocation8 + $0x60] sm:$0xff]
    %v74 = vld [vmem:[#allocation8 + $0x68] sm:$0xff]
    %v75 = vld [vmem:[#allocation8 + $0x70] sm:$0xff]
    %v76 = vld [vmem:[#allocation8 + $0x78] sm:$0xff]
    %v77 = vld [vmem:[%s4] sm:$0x1]
    %v79 = vlaneseq
    %v80 = vshrl.u32 %v79, 7
    %v81 = vsub.s32 0, %v80
    %v82 = vrot.slane %v77, %v81
    %84 = vmatprep.subr.mxu0 0.0
    %85 = vmatpush1.msra.mxu0 %v76
    %86 = vmatprep.subr.mxu0 0.0
    %87 = vmatpush1.msra.mxu0 %v75
    %88 = vmatprep.subr.mxu0 0.0
    %89 = vmatpush1.msra.mxu0 %v74
    %90 = vmatprep.subr.mxu0 0.0
    %91 = vmatpush1.msra.mxu0 %v73
    %92 = vmatprep.subr.mxu0 0.0
    %93 = vmatpush1.msra.mxu0 %v72
    %94 = vmatprep.subr.mxu0 0.0
    %95 = vmatpush1.msra.mxu0 %v71
    %96 = vmatprep.subr.mxu0 0.0
    %97 = vmatpush1.msra.mxu0 %v70
    %98 = vmatprep.subr.mxu0 0.0
    %99 = vmatpush1.msra.mxu0 %v69
    %100 = vmatprep.subr.mxu0 0.0
    %101 = vmatpush1.msra.mxu0 %v68
    %102 = vmatprep.subr.mxu0 0.0
    %103 = vmatpush1.msra.mxu0 %v67
    %104 = vmatprep.subr.mxu0 0.0
    %105 = vmatpush1.msra.mxu0 %v66
    %106 = vmatprep.subr.mxu0 0.0
    %107 = vmatpush1.msra.mxu0 %v65
    %108 = vmatprep.subr.mxu0 0.0
    %109 = vmatpush1.msra.mxu0 %v64
    %110 = vmatprep.subr.mxu0 0.0
    %111 = vmatpush1.msra.mxu0 %v63
    %112 = vmatprep.subr.mxu0 0.0
    %113 = vmatpush1.msra.mxu0 %v62
    %114 = vmatprep.subr.mxu0 0.0
    %115 = vmatpush1.msra.mxu0 %v61
    %116 = vmatprep.subr.mxu0 0.0
    %117 = vmatpush2.msra.mxu0 0.0
    %118 = vmatprep.subr.mxu0 0.0
    %119 = vmatpush2.msra.mxu0 0.0
    %120 = vmatprep.subr.mxu0 0.0
    %121 = vmatpush2.msra.mxu0 0.0
    %122 = vmatprep.subr.mxu0 0.0
    %123 = vmatpush2.msra.mxu0 0.0
    %124 = vmatprep.subr.mxu0 0.0
    %125 = vmatpush2.msra.mxu0 0.0
    %126 = vmatprep.subr.mxu0 0.0
    %127 = vmatpush2.msra.mxu0 0.0
    %128 = vmatprep.subr.mxu0 0.0
    %129 = vmatpush2.msra.mxu0 0.0
    %130 = vmatprep.subr.mxu0 0.0
    %131 = vmatpush2.msra.mxu0 0.0
    %132 = vmatprep.subr.mxu0 0.0
    %133 = vmatpush2.msra.mxu0 0.0
    %134 = vmatprep.subr.mxu0 0.0
    %135 = vmatpush2.msra.mxu0 0.0
    %136 = vmatprep.subr.mxu0 0.0
    %137 = vmatpush2.msra.mxu0 0.0
    %138 = vmatprep.subr.mxu0 0.0
    %139 = vmatpush2.msra.mxu0 0.0
    %140 = vmatprep.subr.mxu0 0.0
    %141 = vmatpush2.msra.mxu0 0.0
    %142 = vmatprep.subr.mxu0 0.0
    %143 = vmatpush2.msra.mxu0 0.0
    %144 = vmatprep.subr.mxu0 0.0
    %145 = vmatpush2.msra.mxu0 0.0
    %146 = vmatprep.subr.mxu0 0.0
    %147 = vmatpush2.msra.mxu0 0.0
    %148 = vmatprep.mubr.f32.mxu0 0.0
    %149 = vmatmul.mubr.f32.gmra.mxu0 %v60
    %v150 = vpop.f32.mrf.mxu0
    %v151 = vadd.f32 %v82, %v150
    %v152 = vpop.f32.mrf.mxu0
    %153 = vdwg.mxu0
    %154 = vadd.xlane.f32.xlu0 %v151
    %v155 = vpop.xlane.xlu0 %154
    %v156 = vrot.slane %v155, 4
    %v157 = vadd.f32 %v155, %v156
    %v158 = vrot.slane %v157, 2
    %v159 = vadd.f32 %v157, %v158
    %v160 = vrot.slane %v159, 1
    %v161 = vadd.f32 %v159, %v160
    %v162 = vld [vmem:[#allocation2] sm:$0x1]
    %v163 = vadd.f32 %v161, %v162
    %vm164 = vcmp.gt.f32.partialorder %v163, 0.0
    %v165 = vsel %vm164, 1.0, -1.0
    %v167 = vlaneseq
    %v168 = vshrl.u32 %v167, 7
    %v169 = vsub.s32 0, %v168
    %v170 = vrot.slane %v165, %v169
    %171 = vset.pattern.permute.xlu0 0
    %172 = vperm.xlu0 %171, %v170
    %v173 = vpop.permute.xlu0 %172
    %v175 = vmul.f32 %v173, %v151
    %v176 = vld [vmem:[#allocation6] sm:$0xff]
    %v177 = vadd.f32 %v175, %v176
    %v178 = vtanh.pop %v177
    %179 = vst [vmem:[#allocation9] sm:$0xff] %v178
    // Predicated region
    $region34: #{tpu_custom_call.1} parent=1 // pred_check
      _
    $region35: #{tpu_custom_call.1} parent=1 // pred_check_branch
      %181 = sbr.rel (0) target = $region37
    $region36: #{tpu_custom_call.1} parent=1 // pred_region
      %s183 = ssub.s32 128, 128
      %184 = vsyncadd [#allocation5], %s183
      %s186 = sshll.u32 [#allocation9], 4
      %s187 = int_to_ptr.vmem [resolvable:$true] %s186
      %189 = dma.vmem_to_hbm [thread:$0]  %s187, 128, %s5, [#allocation5]
    $region37: #{tpu_custom_call.1} parent=1 // pred_fallthru
      _
    // Predicated region
    $region38: #{tpu_custom_call.1} parent=1 // pred_check
      _
    $region39: #{tpu_custom_call.1} parent=1 // pred_check_branch
      %191 = sbr.rel (0) target = $region41
    $region40: #{tpu_custom_call.1} parent=1 // pred_region
      %192 = dma.done [#allocation5], 128
    $region41: #{tpu_custom_call.1} parent=1 // pred_fallthru
      _
    %193 = vsyncpa [#allocation4], 1
    %194 = vsyncpa [#allocation7], 1
    %195 = vsyncpa [#allocation5], 1

</llo_original>
